<compile_context>
chip_gen: v6e
topology: v6e:2x2x1
jax: 0.10.0
libtpu: 0.0.40
codegen_flags: <defaults>
</compile_context>

<pallas_src>
import functools

import jax
import jax.numpy as jnp
from jax.experimental import pallas as pl
from jax.experimental.pallas import tpu as pltpu

_LANE = 128


# ----------------------------------------------------------------------------
# Kernels
# ----------------------------------------------------------------------------
def _masked_pool_kernel(x_ref, m_ref, o_ref, acc_ref, den_ref, *, ts, seq_len, tail):
    # x_ref: (TB, TS, TH) native dtype   m_ref: (TB, TS, 1)
    # o_ref: (TB, TH)  acc_ref: (TB, TH) f32  den_ref: (TB, 1) f32
    s = pl.program_id(2)

    @pl.when(s == 0)
    def _():
        acc_ref[...] = jnp.zeros_like(acc_ref)
        den_ref[...] = jnp.zeros_like(den_ref)

    x = x_ref[...].astype(jnp.float32)
    m = m_ref[...].astype(jnp.float32)          # (TB, TS, 1) -> lane splat over H
    if tail:
        # Last S-block may extend past seq_len: padded rows hold unspecified data and
        # must not contribute to either the numerator or the denominator.
        row = jax.lax.broadcasted_iota(jnp.int32, (1, ts, 1), 1)
        valid = (s * ts + row) < seq_len
        m = jnp.where(valid, m, 0.0)
        prod = jnp.where(valid, x * m, 0.0)     # guards NaN garbage in padded x rows
    else:
        prod = x * m
    acc_ref[...] += jnp.sum(prod, axis=1)       # (TB, TH)
    den_ref[...] += jnp.sum(m, axis=1)          # (TB, 1)

    @pl.when(s == pl.num_programs(2) - 1)
    def _():
        # Single divide off the streaming path (PyTorch: no zero-denominator guard).
        o_ref[...] = (acc_ref[...] / den_ref[...]).astype(o_ref.dtype)


def _mean_axis0_kernel(x_ref, o_ref, acc_ref, *, tb, batch, tail):
    # x_ref: (TBB, TS, TH)   o_ref: (TS, TH)   acc_ref: (TS, TH) f32
    b = pl.program_id(2)

    @pl.when(b == 0)
    def _():
        acc_ref[...] = jnp.zeros_like(acc_ref)

    x = x_ref[...].astype(jnp.float32)
    if tail:
        row = jax.lax.broadcasted_iota(jnp.int32, (tb, 1, 1), 0)
        valid = (b * tb + row) < batch
        x = jnp.where(valid, x, 0.0)
    acc_ref[...] += jnp.sum(x, axis=0)          # reduce TBB batches per step

    @pl.when(b == pl.num_programs(2) - 1)
    def _():
        o_ref[...] = (acc_ref[...] * (1.0 / batch)).astype(o_ref.dtype)


# ----------------------------------------------------------------------------
# Tile selection helpers
# ----------------------------------------------------------------------------
def _round_up(x, m):
    return ((x + m - 1) // m) * m


def _round_down(x, m):
    return (x // m) * m


def _cdiv(a, b):
    return -(-a // b)


def _sublane_align(dtype):
    # sub-32-bit dtypes pack along sublanes: 16 rows for 2-byte, 32 for 1-byte
    return {4: 8, 2: 16, 1: 32}.get(jnp.dtype(dtype).itemsize, 8)


def _vmem_capacity_bytes():
    try:
        cap = getattr(pltpu.get_tpu_info(), "vmem_capacity_bytes", None)
        if cap:
            return int(cap)
    except Exception:
        pass
    return 64 * 1024 * 1024  # conservative: v7x per-TensorCore VMEM


def _split_tile(dim, align):
    """Largest align-multiple tile that yields >=2 blocks along `dim`, or None."""
    if dim <= align:
        return None
    half = _round_up(_cdiv(dim, 2), align)
    if half >= dim:
        half = _round_down(dim - 1, align)
    if half < align or half >= dim:
        return None
    return half


def _vmem_limit(est_bytes, cap):
    return int(min(cap, max(est_bytes * 5 // 4, est_bytes + (8 << 20), 32 << 20)))


# ----------------------------------------------------------------------------
# Wrapper
# ----------------------------------------------------------------------------
def global_average_pooling_1d(inputs, mask=None, *, block_b=None, block_s=None,
                              block_h=None):
    """Pallas equivalent of GlobalAveragePooling1D.forward.

    block_b/block_s/block_h are optional tile overrides (testing / tuning)."""
    B, S, H = inputs.shape
    x_item = jnp.dtype(inputs.dtype).itemsize
    x_bytes = inputs.size * x_item

    cap = _vmem_capacity_bytes()                      # 64 MiB v7x, 128 MiB v5e/v6e
    budget = min(cap * 3 // 4, 96 * 1024 * 1024)      # total scoped-VMEM target
    x_db_target = min(16 * 1024 * 1024, budget // 3)  # x double-buffer target

    if mask is not None:
        # --- masked path: sum(x*m, dim=1) / sum(m, dim=1) -> (B, H) ---------
        if mask.dtype == jnp.bool_:
            mask = mask.astype(jnp.bfloat16)          # exact 0/1, halves lane-padded VMEM
        elif not jnp.issubdtype(mask.dtype, jnp.floating) or mask.dtype == jnp.float64:
            mask = mask.astype(jnp.float32)
        mask3 = mask.reshape(B, S, 1)                 # S on sublanes, lane splat over H
        m_item = jnp.dtype(mask3.dtype).itemsize
        align_s = max(_sublane_align(inputs.dtype), _sublane_align(mask3.dtype))

        # batch tile: output-block sublane dim must be a multiple of 8 or == B
        TB = B if B <= 8 else 8

        # lane tile: prefer full H (contiguous DMA rows, single mask read, dense stores)
        min_ts = min(S, align_s)
        if H <= _LANE or 2 * TB * min_ts * H * x_item <= x_db_target:
            TH = H
        else:
            TH = max(_LANE, _round_down(x_db_target // (2 * TB * min_ts * x_item), _LANE))

        # make sure v7x's second TensorCore has work when legally possible
        if _cdiv(B, TB) * _cdiv(H, TH) < 2:
            alt = _split_tile(H, _LANE)
            if alt is not None:
                TH = alt

        if block_b is not None:
            TB = block_b
        if block_h is not None:
            TH = block_h

        # reduction (sublane) tile from the VMEM budget
        out_db = 2 * _round_up(TB, 8) * _round_up(TH, _LANE) * 4
        fixed = out_db + _round_up(TB, 8) * _round_up(TH, _LANE) * 4 \
            + _round_up(TB, 8) * _LANE * 4
        per_row = 2 * TB * TH * x_item + 2 * TB * _LANE * m_item  # mask lane-padded
        ts_cap = max(min(x_db_target // max(2 * TB * TH * x_item, 1),
                         (budget - fixed) // per_row), align_s)
        TS = S if ts_cap >= S else max(align_s, _round_down(ts_cap, align_s))
        if block_s is not None:
            TS = block_s

        grid = (_cdiv(B, TB), _cdiv(H, TH), _cdiv(S, TS))   # reduction axis last
        tail_s = (S % TS) != 0

        est = per_row * TS + fixed
        out_dtype = jnp.float32        # torch promotes inputs * mask.float() to f32
        m_bytes = mask3.size * m_item
        o_bytes = B * H * 4

        kernel = functools.partial(_masked_pool_kernel, ts=TS, seq_len=S, tail=tail_s)
        return pl.pallas_call(
            kernel,
            out_shape=jax.ShapeDtypeStruct((B, H), out_dtype),
            grid_spec=pltpu.PrefetchScalarGridSpec(
                num_scalar_prefetch=0,
                grid=grid,
                in_specs=[
                    pl.BlockSpec((TB, TS, TH), lambda b, h, s: (b, s, h)),
                    pl.BlockSpec((TB, TS, 1), lambda b, h, s: (b, s, 0)),
                ],
                out_specs=pl.BlockSpec((TB, TH), lambda b, h, s: (b, h)),
                scratch_shapes=[
                    pltpu.VMEM((TB, TH), jnp.float32),   # numerator accumulator
                    pltpu.VMEM((TB, 1), jnp.float32),    # denominator accumulator
                ],
            ),
            compiler_params=pltpu.CompilerParams(
                dimension_semantics=("parallel", "parallel", "arbitrary"),
                vmem_limit_bytes=_vmem_limit(est, cap),
            ),
            cost_estimate=pl.CostEstimate(
                flops=2 * B * S * H + B * S + B * H,
                transcendentals=0,
                bytes_accessed=x_bytes + m_bytes + o_bytes,
            ),
        )(inputs, mask3)

    else:
        # --- no-mask path: mean over the batch axis -> (S, H) ----------------
        out_dtype = inputs.dtype       # torch.mean preserves floating dtype
        o_item = jnp.dtype(out_dtype).itemsize
        align_s = _sublane_align(inputs.dtype)

        TBB = B if B <= 8 else 8       # several batches reduced per grid step

        min_ts = min(S, align_s)
        if H <= _LANE or 2 * TBB * min_ts * H * x_item <= x_db_target:
            TH = H
        else:
            TH = max(_LANE, _round_down(x_db_target // (2 * TBB * min_ts * x_item), _LANE))

        per_row = (2 * TBB * TH * x_item                 # x double-buffer
                   + 2 * _round_up(TH, _LANE) * o_item   # out double-buffer
                   + _round_up(TH, _LANE) * 4)           # f32 accumulator
        ts_cap = max(min(x_db_target // max(2 * TBB * TH * x_item, 1),
                         budget // per_row), align_s)
        TS = S if ts_cap >= S else max(align_s, _round_down(ts_cap, align_s))

        # expose >=2 parallel tiles for v7x when legally possible
        if _cdiv(S, TS) * _cdiv(H, TH) < 2:
            alt = _split_tile(S, align_s)
            if alt is not None:
                TS = alt
            else:
                alt = _split_tile(H, _LANE)
                if alt is not None:
                    TH = alt

        if block_b is not None:
            TBB = block_b
        if block_h is not None:
            TH = block_h
        if block_s is not None:
            TS = block_s

        grid = (_cdiv(S, TS), _cdiv(H, TH), _cdiv(B, TBB))   # reduction (B) last
        tail_b = (B % TBB) != 0

        est = (2 * TBB * TS * TH * x_item
               + 2 * _round_up(TS, 8) * _round_up(TH, _LANE) * o_item
               + _round_up(TS, 8) * _round_up(TH, _LANE) * 4)
        o_bytes = S * H * o_item

        kernel = functools.partial(_mean_axis0_kernel, tb=TBB, batch=B, tail=tail_b)
        return pl.pallas_call(
            kernel,
            out_shape=jax.ShapeDtypeStruct((S, H), out_dtype),
            grid_spec=pltpu.PrefetchScalarGridSpec(
                num_scalar_prefetch=0,
                grid=grid,
                in_specs=[pl.BlockSpec((TBB, TS, TH), lambda s, h, b: (b, s, h))],
                out_specs=pl.BlockSpec((TS, TH), lambda s, h, b: (s, h)),
                scratch_shapes=[pltpu.VMEM((TS, TH), jnp.float32)],
            ),
            compiler_params=pltpu.CompilerParams(
                dimension_semantics=("parallel", "parallel", "arbitrary"),
                vmem_limit_bytes=_vmem_limit(est, cap),
            ),
            cost_estimate=pl.CostEstimate(
                flops=B * S * H + S * H,
                transcendentals=0,
                bytes_accessed=x_bytes + o_bytes,
            ),
        )(inputs)


# ----------------------------------------------------------------------------
# Self-test
# ----------------------------------------------------------------------------
if __name__ == "__main__":
    key = jax.random.PRNGKey(0)
    k1, k2, k3, k4, k5, k6 = jax.random.split(key, 6)

    # ---- small shape consistent with the module: (B, S, H) = (2, 8, 32) ----
    B, S, H = 2, 8, 32
    x = jax.random.normal(k1, (B, S, H), dtype=jnp.float32)
    mask = (jax.random.uniform(k2, (B, S)) > 0.4).astype(jnp.float32)
    mask = mask.at[:, 0].set(1.0)  # at least one valid token per row

    out = jax.block_until_ready(global_average_pooling_1d(x, mask))
    ref = jnp.sum(x * mask[:, :, None], axis=1) / jnp.sum(mask[:, :, None], axis=1)
    assert out.shape == (B, H)
    assert jnp.allclose(out, ref, atol=1e-5, rtol=1e-5)

    out_nm = jax.block_until_ready(global_average_pooling_1d(x))
    assert out_nm.shape == (S, H)
    assert jnp.allclose(out_nm, jnp.mean(x, axis=0), atol=1e-5, rtol=1e-5)

    # ---- medium shape: multi-step grid, partial batch blocks, batched no-mask ----
    B2, S2, H2 = 12, 1024, 128
    x2 = jax.random.normal(k3, (B2, S2, H2), dtype=jnp.float32)
    mask2 = (jax.random.uniform(k4, (B2, S2)) > 0.3).astype(jnp.float32)
    mask2 = mask2.at[:, 0].set(1.0)

    out2 = jax.block_until_ready(global_average_pooling_1d(x2, mask2))
    ref2 = jnp.sum(x2 * mask2[:, :, None], axis=1) / jnp.sum(mask2[:, :, None], axis=1)
    assert out2.shape == (B2, H2)
    assert jnp.allclose(out2, ref2, atol=1e-4, rtol=1e-5)

    out2n = jax.block_until_ready(global_average_pooling_1d(x2))   # B tail-masked path
    ref2n = jnp.sum(x2.astype(jnp.float32), axis=0) / B2
    assert out2n.shape == (S2, H2)
    assert jnp.allclose(out2n, ref2n, atol=1e-4, rtol=1e-5)

    # ---- awkward shape + forced small S-tile: exercises cdiv grid + tail masking ----
    B3, S3, H3 = 4, 300, 160
    x3 = jax.random.normal(k5, (B3, S3, H3), dtype=jnp.float32)
    mask3 = (jax.random.uniform(k6, (B3, S3)) > 0.5).astype(jnp.float32)
    mask3 = mask3.at[:, 0].set(1.0)

    out3 = jax.block_until_ready(global_average_pooling_1d(x3, mask3, block_s=128))
    ref3 = jnp.sum(x3 * mask3[:, :, None], axis=1) / jnp.sum(mask3[:, :, None], axis=1)
    assert out3.shape == (B3, H3)
    assert jnp.allclose(out3, ref3, atol=1e-4, rtol=1e-5)

    # ---- bf16 inputs + bool mask: native-dtype streaming, f32 output ----
    B4, S4, H4 = 3, 256, 384
    x4 = jax.random.normal(k5, (B4, S4, H4), dtype=jnp.bfloat16)
    mask4 = jax.random.uniform(k6, (B4, S4)) > 0.5
    mask4 = mask4.at[:, 0].set(True)

    out4 = jax.block_until_ready(global_average_pooling_1d(x4, mask4))
    m4 = mask4.astype(jnp.float32)[:, :, None]
    ref4 = jnp.sum(x4.astype(jnp.float32) * m4, axis=1) / jnp.sum(m4, axis=1)
    assert out4.shape == (B4, H4) and out4.dtype == jnp.float32
    assert jnp.allclose(out4, ref4, atol=1e-3, rtol=1e-3)

    print("KERNEL_OK")
</pallas_src>

<mosaic_0001>
module attributes {stable_mosaic.version = 11 : i64} {
  func.func @_masked_pool_kernel(%arg0: i32, %arg1: i32, %arg2: i32, %arg3: memref<2x8x32xf32, #tpu.memory_space<vmem>>, %arg4: memref<2x8x1xf32, #tpu.memory_space<vmem>>, %arg5: memref<2x32xf32, #tpu.memory_space<vmem>>, %arg6: memref<2x32xf32, #tpu.memory_space<vmem>>, %arg7: memref<2x1xf32, #tpu.memory_space<vmem>>) attributes {dimension_semantics = [#tpu.dimension_semantics<parallel>, #tpu.dimension_semantics<parallel>, #tpu.dimension_semantics<arbitrary>], iteration_bounds = array<i64: 1, 1, 1>, scalar_prefetch = 0 : i64, scratch_operands = 2 : i64, tpu.core_type = #tpu.core_type<tc>, window_params = [{transform_indices = @transform_0, window_bounds = array<i64: 2, 8, 32>}, {transform_indices = @transform_1, window_bounds = array<i64: 2, 8, 1>}, {transform_indices = @transform_2, window_bounds = array<i64: 2, 32>}]} {
    %c0_i32 = arith.constant 0 : i32
    %0 = arith.cmpi eq, %arg2, %c0_i32 : i32
    %1 = arith.extui %0 : i1 to i32
    %c0_i32_0 = arith.constant 0 : i32
    %2 = arith.cmpi ne, %1, %c0_i32_0 : i32
    scf.if %2 {
      %cst_17 = arith.constant 0.000000e+00 : f32
      %18 = vector.broadcast %cst_17 : f32 to vector<2x32xf32>
      %c0_18 = arith.constant 0 : index
      %c0_19 = arith.constant 0 : index
      %19 = vector.load %arg6[%c0_18, %c0_19] : memref<2x32xf32, #tpu.memory_space<vmem>>, vector<2x32xf32>
      tpu.vector_store %arg6[%c0_18, %c0_19], %18 {strides = array<i32>} : memref<2x32xf32, #tpu.memory_space<vmem>>, vector<2x32xf32>,
      %cst_20 = arith.constant 0.000000e+00 : f32
      %20 = vector.broadcast %cst_20 : f32 to vector<2x1xf32>
      %c0_21 = arith.constant 0 : index
      %c0_22 = arith.constant 0 : index
      %21 = vector.load %arg7[%c0_21, %c0_22] : memref<2x1xf32, #tpu.memory_space<vmem>>, vector<2x1xf32>
      tpu.vector_store %arg7[%c0_21, %c0_22], %20 {strides = array<i32>} : memref<2x1xf32, #tpu.memory_space<vmem>>, vector<2x1xf32>,
    } else {
    }
    %c0 = arith.constant 0 : index
    %c0_1 = arith.constant 0 : index
    %c0_2 = arith.constant 0 : index
    %3 = vector.load %arg3[%c0, %c0_1, %c0_2] : memref<2x8x32xf32, #tpu.memory_space<vmem>>, vector<2x8x32xf32>
    %c0_3 = arith.constant 0 : index
    %c0_4 = arith.constant 0 : index
    %c0_5 = arith.constant 0 : index
    %4 = vector.load %arg4[%c0_3, %c0_4, %c0_5] : memref<2x8x1xf32, #tpu.memory_space<vmem>>, vector<2x8x1xf32>
    %5 = vector.broadcast %4 : vector<2x8x1xf32> to vector<2x8x32xf32>
    %6 = arith.mulf %3, %5 : vector<2x8x32xf32>
    %c0_6 = arith.constant 0 : index
    %c0_7 = arith.constant 0 : index
    %7 = vector.load %arg6[%c0_6, %c0_7] : memref<2x32xf32, #tpu.memory_space<vmem>>, vector<2x32xf32>
    %cst = arith.constant dense<0.000000e+00> : vector<2x32xf32>
    %8 = vector.multi_reduction <add>, %6, %cst [1] : vector<2x8x32xf32> to vector<2x32xf32>
    %9 = arith.addf %7, %8 : vector<2x32xf32>
    %c0_8 = arith.constant 0 : index
    %c0_9 = arith.constant 0 : index
    %10 = vector.load %arg6[%c0_8, %c0_9] : memref<2x32xf32, #tpu.memory_space<vmem>>, vector<2x32xf32>
    tpu.vector_store %arg6[%c0_8, %c0_9], %9 {strides = array<i32>} : memref<2x32xf32, #tpu.memory_space<vmem>>, vector<2x32xf32>,
    %c0_10 = arith.constant 0 : index
    %c0_11 = arith.constant 0 : index
    %11 = vector.load %arg7[%c0_10, %c0_11] : memref<2x1xf32, #tpu.memory_space<vmem>>, vector<2x1xf32>
    %cst_12 = arith.constant dense<0.000000e+00> : vector<2x1xf32>
    %12 = vector.multi_reduction <add>, %4, %cst_12 [1] : vector<2x8x1xf32> to vector<2x1xf32>
    %13 = arith.addf %11, %12 : vector<2x1xf32>
    %c0_13 = arith.constant 0 : index
    %c0_14 = arith.constant 0 : index
    %14 = vector.load %arg7[%c0_13, %c0_14] : memref<2x1xf32, #tpu.memory_space<vmem>>, vector<2x1xf32>
    tpu.vector_store %arg7[%c0_13, %c0_14], %13 {strides = array<i32>} : memref<2x1xf32, #tpu.memory_space<vmem>>, vector<2x1xf32>,
    %c0_i32_15 = arith.constant 0 : i32
    %15 = arith.cmpi eq, %arg2, %c0_i32_15 : i32
    %16 = arith.extui %15 : i1 to i32
    %c0_i32_16 = arith.constant 0 : i32
    %17 = arith.cmpi ne, %16, %c0_i32_16 : i32
    scf.if %17 {
      %c0_17 = arith.constant 0 : index
      %c0_18 = arith.constant 0 : index
      %18 = vector.load %arg6[%c0_17, %c0_18] : memref<2x32xf32, #tpu.memory_space<vmem>>, vector<2x32xf32>
      %c0_19 = arith.constant 0 : index
      %c0_20 = arith.constant 0 : index
      %19 = vector.load %arg7[%c0_19, %c0_20] : memref<2x1xf32, #tpu.memory_space<vmem>>, vector<2x1xf32>
      %20 = vector.broadcast %19 : vector<2x1xf32> to vector<2x32xf32>
      %21 = arith.divf %18, %20 : vector<2x32xf32>
      %c0_21 = arith.constant 0 : index
      %c0_22 = arith.constant 0 : index
      %22 = vector.load %arg5[%c0_21, %c0_22] : memref<2x32xf32, #tpu.memory_space<vmem>>, vector<2x32xf32>
      tpu.vector_store %arg5[%c0_21, %c0_22], %21 {strides = array<i32>} : memref<2x32xf32, #tpu.memory_space<vmem>>, vector<2x32xf32>,
    } else {
    }
    return
  }
  func.func @transform_0(%arg0: i32, %arg1: i32, %arg2: i32) -> (i32, i32, i32) {
    %c0_i32 = arith.constant 0 : i32
    return %arg0, %arg2, %arg1 : i32, i32, i32
  }
  func.func @transform_1(%arg0: i32, %arg1: i32, %arg2: i32) -> (i32, i32, i32) {
    %c0_i32 = arith.constant 0 : i32
    %c0_i32_0 = arith.constant 0 : i32
    return %arg0, %arg2, %c0_i32 : i32, i32, i32
  }
  func.func @transform_2(%arg0: i32, %arg1: i32, %arg2: i32) -> (i32, i32) {
    %c0_i32 = arith.constant 0 : i32
    return %arg0, %arg1 : i32, i32
  }
}

</mosaic_0001>

<llo_original>
// kernel: tpu_custom_call.1
$region0: #{tpu_custom_call.1}
  #allocation0 [shape = 'u32[]', space=smem, size = 0x4, offset = 0x4, fixed_abs, tag = 'smem constant byte address 0x4 - core index']
  #allocation1 [shape = 'u32[144,128]{1,0:T(1,128)}', space=vmem, size = 0x12000, scoped, tag = 'internal scratch']
  #allocation2 [shape = 'f32[2,32]{1,0:T(2,128)}', space=vmem, size = 0x400, scoped, tag = 'scratch operand']
  #allocation3 [shape = 'f32[2,1]{1,0:T(2,128)}', space=vmem, size = 0x400, scoped, tag = 'scratch operand']
  %s0 = inlined_call_operand.vmem [shape: f32[2,8,32], index: 0, kind: input, shape index: {}]
  %s1 = inlined_call_operand.vmem [shape: f32[2,8,1], index: 1, kind: input, shape index: {}]
  %s2 = inlined_call_operand.hbm [shape: f32[2,32], index: 2, kind: output, shape index: {}]
  %s3 = sld [smem:[#allocation0]]
  $region26: #{tpu_custom_call.1} parent=0
    _
  %s5 = ssub.s32 1, %s3
  %s6 = scalar_select 0, %s5, %s3
  $region1: #{tpu_custom_call.1} parent=0
    #allocation4 [shape = 'u8[1024]{0}', space=vmem, size = 0x400, scoped, tag = 'output window, operand 0, single buffered']
    #allocation5 [shape = 's32[1]{0}', space=sflag, size = 0x4, scoped, tag = 'scoped memory for tpu_custom_call.1']
    %7 = vsyncpa [#allocation5], 0
    // Predicated region
    $region2: #{tpu_custom_call.1} parent=1 // pred_check
      _
    $region3: #{tpu_custom_call.1} parent=1 // pred_check_branch
      %9 = sbr.rel (0) target = $region5
    $region4: #{tpu_custom_call.1} parent=1 // pred_region
      _
    $region5: #{tpu_custom_call.1} parent=1 // pred_fallthru
      _
    // Predicated region
    $region6: #{tpu_custom_call.1} parent=1 // pred_check
      _
    $region7: #{tpu_custom_call.1} parent=1 // pred_check_branch
      %11 = sbr.rel (0) target = $region9
    $region8: #{tpu_custom_call.1} parent=1 // pred_region
      _
    $region9: #{tpu_custom_call.1} parent=1 // pred_fallthru
      _
    %p12 = scmp.eq.s32.totalorder 0, 0
    // Predicated region
    $region10: #{tpu_custom_call.1} parent=1 // pred_check
      %p13 = pneg %p12
    $region11: #{tpu_custom_call.1} parent=1 // pred_check_branch
      %15 = sbr.rel (%p13) target = $region13
    $region12: #{tpu_custom_call.1} parent=1 // pred_region
      %vm16 = vcmask 254976
      %17 = vst.msk [vmem:[#allocation2] sm:$0x3] %vm16, 0.0
      %vm18 = vcmask 1024
      %19 = vst.msk [vmem:[#allocation3] sm:$0x3] %vm18, 0.0
    $region13: #{tpu_custom_call.1} parent=1 // pred_fallthru
      _
    %v20 = vld [vmem:[%s0] sm:$0xff]
    %v21 = vld [vmem:[%s0 + $0x8] sm:$0xff]
    %v22 = vld [vmem:[%s1] sm:$0xff]
    %v23 = vld [vmem:[%s1 + $0x8] sm:$0xff]
    %25 = vset.pattern.permute.xlu0 0
    %26 = vperm.xlu0 %25, %v22
    %v27 = vpop.permute.xlu0 %26
    %30 = vset.pattern.permute.xlu0 0
    %31 = vperm.xlu0 %30, %v23
    %v32 = vpop.permute.xlu0 %31
    %v34 = vmul.f32 %v20, %v27
    %v35 = vmul.f32 %v21, %v32
    %v36 = vld [vmem:[#allocation2] sm:$0x3]
    %vm37 = vcmask 261120
    %v38 = vsel %vm37, %v34, 0.0
    %v39 = vrot.slane %v38, 4
    %v40 = vadd.f32 %v38, %v39
    %v41 = vrot.slane %v40, 2
    %v42 = vadd.f32 %v40, %v41
    %v43 = vrot.slane %v42, 1
    %v44 = vadd.f32 %v42, %v43
    %v45 = vsel %vm37, %v35, 0.0
    %v46 = vrot.slane %v45, 4
    %v47 = vadd.f32 %v45, %v46
    %v48 = vrot.slane %v47, 2
    %v49 = vadd.f32 %v47, %v48
    %v50 = vrot.slane %v49, 1
    %v51 = vadd.f32 %v49, %v50
    %vm54 = vcmask 1041409
    %v55 = vsel %vm54, %v51, %v44
    %v57 = vadd.f32 %v36, %v55
    %vm58 = vcmask 254976
    %59 = vst.msk [vmem:[#allocation2] sm:$0x3] %vm58, %v57
    %v60 = vld [vmem:[#allocation3] sm:$0x3]
    %vm61 = vcmask 7168
    %v62 = vsel %vm61, %v22, 0.0
    %v63 = vrot.slane %v62, 4
    %v64 = vadd.f32 %v62, %v63
    %v65 = vrot.slane %v64, 2
    %v66 = vadd.f32 %v64, %v65
    %v67 = vrot.slane %v66, 1
    %v68 = vadd.f32 %v66, %v67
    %v69 = vsel %vm61, %v23, 0.0
    %v70 = vrot.slane %v69, 4
    %v71 = vadd.f32 %v69, %v70
    %v72 = vrot.slane %v71, 2
    %v73 = vadd.f32 %v71, %v72
    %v74 = vrot.slane %v73, 1
    %v75 = vadd.f32 %v73, %v74
    %v78 = vsel %vm54, %v75, %v68
    %v80 = vadd.f32 %v60, %v78
    %vm81 = vcmask 1024
    %82 = vst.msk [vmem:[#allocation3] sm:$0x3] %vm81, %v80
    // Predicated region
    $region14: #{tpu_custom_call.1} parent=1 // pred_check
      %p83 = pneg %p12
    $region15: #{tpu_custom_call.1} parent=1 // pred_check_branch
      %85 = sbr.rel (%p83) target = $region17
    $region16: #{tpu_custom_call.1} parent=1 // pred_region
      %v86 = vld [vmem:[#allocation2] sm:$0x3]
      %v87 = vld [vmem:[#allocation3] sm:$0x3]
      %89 = vset.pattern.permute.xlu0 0
      %90 = vperm.xlu0 %89, %v87
      %v91 = vpop.permute.xlu0 %90
      %v93 = vrcp.pop %v91
      %v94 = vmul.f32 %v86, %v93
      %95 = vst.msk [vmem:[#allocation4] sm:$0x3] %vm58, %v94
    $region17: #{tpu_custom_call.1} parent=1 // pred_fallthru
      _
    // Predicated region
    $region18: #{tpu_custom_call.1} parent=1 // pred_check
      _
    $region19: #{tpu_custom_call.1} parent=1 // pred_check_branch
      %97 = sbr.rel (0) target = $region21
    $region20: #{tpu_custom_call.1} parent=1 // pred_region
      %s99 = ssub.s32 32, 32
      %100 = vsyncadd [#allocation5], %s99
      %s102 = sshll.u32 [#allocation4], 4
      %s103 = int_to_ptr.vmem [resolvable:$true] %s102
      %105 = dma.vmem_to_hbm [thread:$0]  %s103, 32, %s2, [#allocation5]
    $region21: #{tpu_custom_call.1} parent=1 // pred_fallthru
      _
    // Predicated region
    $region22: #{tpu_custom_call.1} parent=1 // pred_check
      _
    $region23: #{tpu_custom_call.1} parent=1 // pred_check_branch
      %107 = sbr.rel (0) target = $region25
    $region24: #{tpu_custom_call.1} parent=1 // pred_region
      %108 = dma.done [#allocation5], 32
    $region25: #{tpu_custom_call.1} parent=1 // pred_fallthru
      _
    %109 = vsyncpa [#allocation5], 1

</llo_original>
